<compile_context>
chip_gen: v7x
topology: tpu7x:2x2x1
jax: 0.10.0
libtpu: 0.0.40
codegen_flags: <defaults>
</compile_context>

<pallas_src>
import jax
import jax.numpy as jnp
from jax.experimental import pallas as pl
from jax.experimental.pallas import tpu as pltpu

_LANES = 128       # vreg lane width
_SUBLANES = 8      # f32 sublanes per vreg
_SMALL_N = 8192    # below this, run the whole (N, 1) array as one block


def _round_up(x, m):
    return ((x + m - 1) // m) * m


def _linear_kernel(x_ref, w_ref, b_ref, o_ref):
    # x_ref / o_ref: VMEM tiles; w_ref: (1, 1) SMEM scalar; b_ref: (1,) SMEM.
    o_ref[...] = x_ref[...] * w_ref[0, 0] + b_ref[0]


def _forward_small(x_f, w_s, b_s, n):
    # Single block, no grid: (N, 1) in -> (N, 1) out, one device op total.
    return pl.pallas_call(
        _linear_kernel,
        out_shape=jax.ShapeDtypeStruct((n, 1), jnp.float32),
        in_specs=[
            pl.BlockSpec(memory_space=pltpu.MemorySpace.VMEM),   # x
            pl.BlockSpec(memory_space=pltpu.MemorySpace.SMEM),   # weight
            pl.BlockSpec(memory_space=pltpu.MemorySpace.SMEM),   # bias
        ],
        out_specs=pl.BlockSpec(memory_space=pltpu.MemorySpace.VMEM),
    )(x_f, w_s, b_s)


def _forward_large(x_f, w_s, b_s, n, tile_rows):
    # Lane-dense slab: view the flat data as (rows, 128).
    x_flat = x_f.reshape(-1)
    n_pad = _round_up(n, _LANES)
    if n_pad != n:
        # Only the last < 128 elements are padded; when N % 128 == 0 this
        # path is completely pad/slice free.
        x_flat = jnp.pad(x_flat, (0, n_pad - n))
    rows = n_pad // _LANES
    x2d = x_flat.reshape(rows, _LANES)

    # (8, 128) rule: tile rows must be a multiple of 8.
    tile_rows = max(_SUBLANES, _round_up(tile_rows, _SUBLANES))
    # Keep >= 2 row blocks so the "parallel" grid axis can be split across
    # both TensorCores on v7x (harmless single extra step elsewhere).
    half_rows = _round_up(pl.cdiv(rows, 2), _SUBLANES)
    tile_r = min(tile_rows, half_rows)
    grid = (pl.cdiv(rows, tile_r),)   # ragged last block is masked by Pallas

    out2d = pl.pallas_call(
        _linear_kernel,
        out_shape=jax.ShapeDtypeStruct((rows, _LANES), jnp.float32),
        grid=grid,
        in_specs=[
            pl.BlockSpec((tile_r, _LANES), lambda i: (i, 0)),    # x slab
            pl.BlockSpec(memory_space=pltpu.MemorySpace.SMEM),   # weight
            pl.BlockSpec(memory_space=pltpu.MemorySpace.SMEM),   # bias
        ],
        out_specs=pl.BlockSpec((tile_r, _LANES), lambda i: (i, 0)),
        compiler_params=pltpu.CompilerParams(
            dimension_semantics=("parallel",),
            vmem_limit_bytes=32 * 1024 * 1024,
        ),
    )(x2d, w_s, b_s)

    out_flat = out2d.reshape(-1)
    if n_pad != n:
        out_flat = out_flat[:n]
    return out_flat.reshape(n, 1)


def mylinear_forward(x, weight, bias, *, tile_rows=8192):
    """y = x @ weight.T + bias for nn.Linear(1, 1).

    x: (N, 1), weight: (1, 1), bias: (1,)  ->  (N, 1) float32
    """
    assert x.ndim == 2 and x.shape[1] == 1, "expected (N, 1) input"
    assert weight.size == 1 and bias.size == 1, "kernel hard-codes Linear(1, 1)"

    n = x.shape[0]
    # Skip cast / reshape ops when the inputs already match (they do here).
    x_f = x if x.dtype == jnp.float32 else x.astype(jnp.float32)
    w_s = weight if weight.dtype == jnp.float32 else weight.astype(jnp.float32)
    b_s = bias if bias.dtype == jnp.float32 else bias.astype(jnp.float32)
    if w_s.shape != (1, 1):
        w_s = w_s.reshape(1, 1)
    if b_s.shape != (1,):
        b_s = b_s.reshape(1)

    if n <= _SMALL_N:
        return _forward_small(x_f, w_s, b_s, n)
    return _forward_large(x_f, w_s, b_s, n, tile_rows)


if __name__ == "__main__":
    key = jax.random.PRNGKey(0)
    kx, kw, kb = jax.random.split(key, 3)

    # Input matching the module's usage: x = torch.rand([500, 1]).
    x = jax.random.uniform(kx, (500, 1), dtype=jnp.float32)

    # nn.Linear(1, 1) default init: U(-1/sqrt(in_features), 1/sqrt(in_features)).
    weight = jax.random.uniform(kw, (1, 1), dtype=jnp.float32, minval=-1.0, maxval=1.0)
    bias = jax.random.uniform(kb, (1,), dtype=jnp.float32, minval=-1.0, maxval=1.0)

    # Shipped case: small-N single-op path.
    out = jax.block_until_ready(mylinear_forward(x, weight, bias))
    ref = x @ weight.T + bias
    assert out.shape == (500, 1)
    assert jnp.allclose(out, ref, atol=1e-6), "small-N path mismatch vs reference"

    # Also exercise the lane-dense large-N path (ragged boundary block).
    x_big = jax.random.uniform(kx, (20000, 1), dtype=jnp.float32)
    out_big = jax.block_until_ready(mylinear_forward(x_big, weight, bias))
    ref_big = x_big @ weight.T + bias
    assert out_big.shape == (20000, 1)
    assert jnp.allclose(out_big, ref_big, atol=1e-6), "large-N path mismatch vs reference"

    print("KERNEL_OK")
</pallas_src>

<mosaic_0001>
module attributes {stable_mosaic.version = 11 : i64} {
  func.func @_linear_kernel(%arg0: memref<500x1xf32, #tpu.memory_space<vmem>>, %arg1: memref<1x1xf32, #tpu.memory_space<smem>>, %arg2: memref<1xf32, #tpu.memory_space<smem>>, %arg3: memref<500x1xf32, #tpu.memory_space<vmem>>) attributes {dimension_semantics = [], scalar_prefetch = 0 : i64, scratch_operands = 0 : i64, tpu.core_type = #tpu.core_type<tc>} {
    %c0 = arith.constant 0 : index
    %c0_0 = arith.constant 0 : index
    %0 = vector.load %arg0[%c0, %c0_0] : memref<500x1xf32, #tpu.memory_space<vmem>>, vector<500x1xf32>
    %c0_1 = arith.constant 0 : index
    %c0_2 = arith.constant 0 : index
    %1 = memref.load %arg1[%c0_1, %c0_2] : memref<1x1xf32, #tpu.memory_space<smem>>
    %2 = vector.broadcast %1 : f32 to vector<500x1xf32>
    %3 = arith.mulf %0, %2 : vector<500x1xf32>
    %c0_3 = arith.constant 0 : index
    %4 = memref.load %arg2[%c0_3] : memref<1xf32, #tpu.memory_space<smem>>
    %5 = vector.broadcast %4 : f32 to vector<500x1xf32>
    %6 = arith.addf %3, %5 : vector<500x1xf32>
    %c0_4 = arith.constant 0 : index
    %c0_5 = arith.constant 0 : index
    %7 = vector.load %arg3[%c0_4, %c0_5] : memref<500x1xf32, #tpu.memory_space<vmem>>, vector<500x1xf32>
    tpu.vector_store %arg3[%c0_4, %c0_5], %6 {strides = array<i32>} : memref<500x1xf32, #tpu.memory_space<vmem>>, vector<500x1xf32>,
    return
  }
}

</mosaic_0001>

<llo_original>
// kernel: tpu_custom_call.1
$region0: #{tpu_custom_call.1}
  #allocation0 [shape = 'u32[]', space=smem, size = 0x4, offset = 0x4, fixed_abs, tag = 'smem constant byte address 0x4 - core index']
  #allocation1 [shape = 'u32[144,128]{1,0:T(1,128)}', space=vmem, size = 0x12000, scoped, tag = 'internal scratch']
  #allocation2 [shape = 'f32[1,1]{1,0:T(1,128)S(6)}', space=smem, size = 0x200, scoped, tag = 'scoped memory for tpu_custom_call.1']
  #allocation3 [shape = 'f32[1]{0:T(128)S(6)}', space=smem, size = 0x200, scoped, tag = 'scoped memory for tpu_custom_call.1']
  %s0 = inlined_call_operand.vmem [shape: f32[500,1], index: 0, kind: input, shape index: {}]
  %s1 = inlined_call_operand.<no memory space> [shape: f32[1,1], index: 1, kind: input, shape index: {}]
  %s2 = inlined_call_operand.<no memory space> [shape: f32[1], index: 2, kind: input, shape index: {}]
  %s3 = inlined_call_operand.vmem [shape: f32[500,1], index: 3, kind: output, shape index: {}]
  %s4 = sld [smem:[#allocation0]]
  $region22: #{tpu_custom_call.1} parent=0
    _
  %s6 = ssub.s32 1, %s4
  %s7 = scalar_select 0, %s6, %s4
  %8 = sst [smem:[#allocation2]] %s1
  %9 = sst [smem:[#allocation3]] %s2
  // Predicated region
  $region2: #{tpu_custom_call.1} parent=0 // pred_check
    _
  $region3: #{tpu_custom_call.1} parent=0 // pred_check_branch
    %11 = sbr.rel (0) target = $region5
  $region4: #{tpu_custom_call.1} parent=0 // pred_region
    _
  $region5: #{tpu_custom_call.1} parent=0 // pred_fallthru
    _
  // Predicated region
  $region6: #{tpu_custom_call.1} parent=0 // pred_check
    _
  $region7: #{tpu_custom_call.1} parent=0 // pred_check_branch
    %13 = sbr.rel (0) target = $region9
  $region8: #{tpu_custom_call.1} parent=0 // pred_region
    _
  $region9: #{tpu_custom_call.1} parent=0 // pred_fallthru
    _
  // Predicated region
  $region10: #{tpu_custom_call.1} parent=0 // pred_check
    _
  $region11: #{tpu_custom_call.1} parent=0 // pred_check_branch
    %15 = sbr.rel (0) target = $region13
  $region12: #{tpu_custom_call.1} parent=0 // pred_region
    _
  $region13: #{tpu_custom_call.1} parent=0 // pred_fallthru
    _
  %v16 = vld [vmem:[%s0] sm:$0xff]
  %v17 = vld [vmem:[%s0 + $0x8] sm:$0xff]
  %v18 = vld [vmem:[%s0 + $0x10] sm:$0xff]
  %v19 = vld [vmem:[%s0 + $0x18] sm:$0xff]
  %v20 = vld [vmem:[%s0 + $0x20] sm:$0xff]
  %v21 = vld [vmem:[%s0 + $0x28] sm:$0xff]
  %v22 = vld [vmem:[%s0 + $0x30] sm:$0xff]
  %v23 = vld [vmem:[%s0 + $0x38] sm:$0xff]
  %v24 = vld [vmem:[%s0 + $0x40] sm:$0xff]
  %v25 = vld [vmem:[%s0 + $0x48] sm:$0xff]
  %v26 = vld [vmem:[%s0 + $0x50] sm:$0xff]
  %v27 = vld [vmem:[%s0 + $0x58] sm:$0xff]
  %v28 = vld [vmem:[%s0 + $0x60] sm:$0xff]
  %v29 = vld [vmem:[%s0 + $0x68] sm:$0xff]
  %v30 = vld [vmem:[%s0 + $0x70] sm:$0xff]
  %v31 = vld [vmem:[%s0 + $0x78] sm:$0xff]
  %v32 = vld [vmem:[%s0 + $0x80] sm:$0xff]
  %v33 = vld [vmem:[%s0 + $0x88] sm:$0xff]
  %v34 = vld [vmem:[%s0 + $0x90] sm:$0xff]
  %v35 = vld [vmem:[%s0 + $0x98] sm:$0xff]
  %v36 = vld [vmem:[%s0 + $0xa0] sm:$0xff]
  %v37 = vld [vmem:[%s0 + $0xa8] sm:$0xff]
  %v38 = vld [vmem:[%s0 + $0xb0] sm:$0xff]
  %v39 = vld [vmem:[%s0 + $0xb8] sm:$0xff]
  %v40 = vld [vmem:[%s0 + $0xc0] sm:$0xff]
  %v41 = vld [vmem:[%s0 + $0xc8] sm:$0xff]
  %v42 = vld [vmem:[%s0 + $0xd0] sm:$0xff]
  %v43 = vld [vmem:[%s0 + $0xd8] sm:$0xff]
  %v44 = vld [vmem:[%s0 + $0xe0] sm:$0xff]
  %v45 = vld [vmem:[%s0 + $0xe8] sm:$0xff]
  %v46 = vld [vmem:[%s0 + $0xf0] sm:$0xff]
  %v47 = vld [vmem:[%s0 + $0xf8] sm:$0xff]
  %v48 = vld [vmem:[%s0 + $0x100] sm:$0xff]
  %v49 = vld [vmem:[%s0 + $0x108] sm:$0xff]
  %v50 = vld [vmem:[%s0 + $0x110] sm:$0xff]
  %v51 = vld [vmem:[%s0 + $0x118] sm:$0xff]
  %v52 = vld [vmem:[%s0 + $0x120] sm:$0xff]
  %v53 = vld [vmem:[%s0 + $0x128] sm:$0xff]
  %v54 = vld [vmem:[%s0 + $0x130] sm:$0xff]
  %v55 = vld [vmem:[%s0 + $0x138] sm:$0xff]
  %v56 = vld [vmem:[%s0 + $0x140] sm:$0xff]
  %v57 = vld [vmem:[%s0 + $0x148] sm:$0xff]
  %v58 = vld [vmem:[%s0 + $0x150] sm:$0xff]
  %v59 = vld [vmem:[%s0 + $0x158] sm:$0xff]
  %v60 = vld [vmem:[%s0 + $0x160] sm:$0xff]
  %v61 = vld [vmem:[%s0 + $0x168] sm:$0xff]
  %v62 = vld [vmem:[%s0 + $0x170] sm:$0xff]
  %v63 = vld [vmem:[%s0 + $0x178] sm:$0xff]
  %v64 = vld [vmem:[%s0 + $0x180] sm:$0xff]
  %v65 = vld [vmem:[%s0 + $0x188] sm:$0xff]
  %v66 = vld [vmem:[%s0 + $0x190] sm:$0xff]
  %v67 = vld [vmem:[%s0 + $0x198] sm:$0xff]
  %v68 = vld [vmem:[%s0 + $0x1a0] sm:$0xff]
  %v69 = vld [vmem:[%s0 + $0x1a8] sm:$0xff]
  %v70 = vld [vmem:[%s0 + $0x1b0] sm:$0xff]
  %v71 = vld [vmem:[%s0 + $0x1b8] sm:$0xff]
  %v72 = vld [vmem:[%s0 + $0x1c0] sm:$0xff]
  %v73 = vld [vmem:[%s0 + $0x1c8] sm:$0xff]
  %v74 = vld [vmem:[%s0 + $0x1d0] sm:$0xff]
  %v75 = vld [vmem:[%s0 + $0x1d8] sm:$0xff]
  %v76 = vld [vmem:[%s0 + $0x1e0] sm:$0xff]
  %v77 = vld [vmem:[%s0 + $0x1e8] sm:$0xff]
  %v78 = vld [vmem:[%s0 + $0x1f0] sm:$0xf]
  %s79 = sld [smem:[#allocation2]]
  %v80 = vstv %s79
  %v81 = vmul.f32 %v16, %v80
  %v82 = vmul.f32 %v17, %v80
  %v83 = vmul.f32 %v18, %v80
  %v84 = vmul.f32 %v19, %v80
  %v85 = vmul.f32 %v20, %v80
  %v86 = vmul.f32 %v21, %v80
  %v87 = vmul.f32 %v22, %v80
  %v88 = vmul.f32 %v23, %v80
  %v89 = vmul.f32 %v24, %v80
  %v90 = vmul.f32 %v25, %v80
  %v91 = vmul.f32 %v26, %v80
  %v92 = vmul.f32 %v27, %v80
  %v93 = vmul.f32 %v28, %v80
  %v94 = vmul.f32 %v29, %v80
  %v95 = vmul.f32 %v30, %v80
  %v96 = vmul.f32 %v31, %v80
  %v97 = vmul.f32 %v32, %v80
  %v98 = vmul.f32 %v33, %v80
  %v99 = vmul.f32 %v34, %v80
  %v100 = vmul.f32 %v35, %v80
  %v101 = vmul.f32 %v36, %v80
  %v102 = vmul.f32 %v37, %v80
  %v103 = vmul.f32 %v38, %v80
  %v104 = vmul.f32 %v39, %v80
  %v105 = vmul.f32 %v40, %v80
  %v106 = vmul.f32 %v41, %v80
  %v107 = vmul.f32 %v42, %v80
  %v108 = vmul.f32 %v43, %v80
  %v109 = vmul.f32 %v44, %v80
  %v110 = vmul.f32 %v45, %v80
  %v111 = vmul.f32 %v46, %v80
  %v112 = vmul.f32 %v47, %v80
  %v113 = vmul.f32 %v48, %v80
  %v114 = vmul.f32 %v49, %v80
  %v115 = vmul.f32 %v50, %v80
  %v116 = vmul.f32 %v51, %v80
  %v117 = vmul.f32 %v52, %v80
  %v118 = vmul.f32 %v53, %v80
  %v119 = vmul.f32 %v54, %v80
  %v120 = vmul.f32 %v55, %v80
  %v121 = vmul.f32 %v56, %v80
  %v122 = vmul.f32 %v57, %v80
  %v123 = vmul.f32 %v58, %v80
  %v124 = vmul.f32 %v59, %v80
  %v125 = vmul.f32 %v60, %v80
  %v126 = vmul.f32 %v61, %v80
  %v127 = vmul.f32 %v62, %v80
  %v128 = vmul.f32 %v63, %v80
  %v129 = vmul.f32 %v64, %v80
  %v130 = vmul.f32 %v65, %v80
  %v131 = vmul.f32 %v66, %v80
  %v132 = vmul.f32 %v67, %v80
  %v133 = vmul.f32 %v68, %v80
  %v134 = vmul.f32 %v69, %v80
  %v135 = vmul.f32 %v70, %v80
  %v136 = vmul.f32 %v71, %v80
  %v137 = vmul.f32 %v72, %v80
  %v138 = vmul.f32 %v73, %v80
  %v139 = vmul.f32 %v74, %v80
  %v140 = vmul.f32 %v75, %v80
  %v141 = vmul.f32 %v76, %v80
  %v142 = vmul.f32 %v77, %v80
  %v143 = vmul.f32 %v78, %v80
  %s144 = sld [smem:[#allocation3]]
  %v145 = vstv %s144
  %v146 = vadd.f32 %v81, %v145
  %v147 = vadd.f32 %v82, %v145
  %v148 = vadd.f32 %v83, %v145
  %v149 = vadd.f32 %v84, %v145
  %v150 = vadd.f32 %v85, %v145
  %v151 = vadd.f32 %v86, %v145
  %v152 = vadd.f32 %v87, %v145
  %v153 = vadd.f32 %v88, %v145
  %v154 = vadd.f32 %v89, %v145
  %v155 = vadd.f32 %v90, %v145
  %v156 = vadd.f32 %v91, %v145
  %v157 = vadd.f32 %v92, %v145
  %v158 = vadd.f32 %v93, %v145
  %v159 = vadd.f32 %v94, %v145
  %v160 = vadd.f32 %v95, %v145
  %v161 = vadd.f32 %v96, %v145
  %v162 = vadd.f32 %v97, %v145
  %v163 = vadd.f32 %v98, %v145
  %v164 = vadd.f32 %v99, %v145
  %v165 = vadd.f32 %v100, %v145
  %v166 = vadd.f32 %v101, %v145
  %v167 = vadd.f32 %v102, %v145
  %v168 = vadd.f32 %v103, %v145
  %v169 = vadd.f32 %v104, %v145
  %v170 = vadd.f32 %v105, %v145
  %v171 = vadd.f32 %v106, %v145
  %v172 = vadd.f32 %v107, %v145
  %v173 = vadd.f32 %v108, %v145
  %v174 = vadd.f32 %v109, %v145
  %v175 = vadd.f32 %v110, %v145
  %v176 = vadd.f32 %v111, %v145
  %v177 = vadd.f32 %v112, %v145
  %v178 = vadd.f32 %v113, %v145
  %v179 = vadd.f32 %v114, %v145
  %v180 = vadd.f32 %v115, %v145
  %v181 = vadd.f32 %v116, %v145
  %v182 = vadd.f32 %v117, %v145
  %v183 = vadd.f32 %v118, %v145
  %v184 = vadd.f32 %v119, %v145
  %v185 = vadd.f32 %v120, %v145
  %v186 = vadd.f32 %v121, %v145
  %v187 = vadd.f32 %v122, %v145
  %v188 = vadd.f32 %v123, %v145
  %v189 = vadd.f32 %v124, %v145
  %v190 = vadd.f32 %v125, %v145
  %v191 = vadd.f32 %v126, %v145
  %v192 = vadd.f32 %v127, %v145
  %v193 = vadd.f32 %v128, %v145
  %v194 = vadd.f32 %v129, %v145
  %v195 = vadd.f32 %v130, %v145
  %v196 = vadd.f32 %v131, %v145
  %v197 = vadd.f32 %v132, %v145
  %v198 = vadd.f32 %v133, %v145
  %v199 = vadd.f32 %v134, %v145
  %v200 = vadd.f32 %v135, %v145
  %v201 = vadd.f32 %v136, %v145
  %v202 = vadd.f32 %v137, %v145
  %v203 = vadd.f32 %v138, %v145
  %v204 = vadd.f32 %v139, %v145
  %v205 = vadd.f32 %v140, %v145
  %v206 = vadd.f32 %v141, %v145
  %v207 = vadd.f32 %v142, %v145
  %v208 = vadd.f32 %v143, %v145
  %vm209 = vcmask 7168
  %210 = vst.msk [vmem:[%s3] sm:$0xff] %vm209, %v146
  %211 = vst.msk [vmem:[%s3 + $0x8] sm:$0xff] %vm209, %v147
  %212 = vst.msk [vmem:[%s3 + $0x10] sm:$0xff] %vm209, %v148
  %213 = vst.msk [vmem:[%s3 + $0x18] sm:$0xff] %vm209, %v149
  %214 = vst.msk [vmem:[%s3 + $0x20] sm:$0xff] %vm209, %v150
  %215 = vst.msk [vmem:[%s3 + $0x28] sm:$0xff] %vm209, %v151
  %216 = vst.msk [vmem:[%s3 + $0x30] sm:$0xff] %vm209, %v152
  %217 = vst.msk [vmem:[%s3 + $0x38] sm:$0xff] %vm209, %v153
  %218 = vst.msk [vmem:[%s3 + $0x40] sm:$0xff] %vm209, %v154
  %219 = vst.msk [vmem:[%s3 + $0x48] sm:$0xff] %vm209, %v155
  %220 = vst.msk [vmem:[%s3 + $0x50] sm:$0xff] %vm209, %v156
  %221 = vst.msk [vmem:[%s3 + $0x58] sm:$0xff] %vm209, %v157
  %222 = vst.msk [vmem:[%s3 + $0x60] sm:$0xff] %vm209, %v158
  %223 = vst.msk [vmem:[%s3 + $0x68] sm:$0xff] %vm209, %v159
  %224 = vst.msk [vmem:[%s3 + $0x70] sm:$0xff] %vm209, %v160
  %225 = vst.msk [vmem:[%s3 + $0x78] sm:$0xff] %vm209, %v161
  %226 = vst.msk [vmem:[%s3 + $0x80] sm:$0xff] %vm209, %v162
  %227 = vst.msk [vmem:[%s3 + $0x88] sm:$0xff] %vm209, %v163
  %228 = vst.msk [vmem:[%s3 + $0x90] sm:$0xff] %vm209, %v164
  %229 = vst.msk [vmem:[%s3 + $0x98] sm:$0xff] %vm209, %v165
  %230 = vst.msk [vmem:[%s3 + $0xa0] sm:$0xff] %vm209, %v166
  %231 = vst.msk [vmem:[%s3 + $0xa8] sm:$0xff] %vm209, %v167
  %232 = vst.msk [vmem:[%s3 + $0xb0] sm:$0xff] %vm209, %v168
  %233 = vst.msk [vmem:[%s3 + $0xb8] sm:$0xff] %vm209, %v169
  %234 = vst.msk [vmem:[%s3 + $0xc0] sm:$0xff] %vm209, %v170
  %235 = vst.msk [vmem:[%s3 + $0xc8] sm:$0xff] %vm209, %v171
  %236 = vst.msk [vmem:[%s3 + $0xd0] sm:$0xff] %vm209, %v172
  %237 = vst.msk [vmem:[%s3 + $0xd8] sm:$0xff] %vm209, %v173
  %238 = vst.msk [vmem:[%s3 + $0xe0] sm:$0xff] %vm209, %v174
  %239 = vst.msk [vmem:[%s3 + $0xe8] sm:$0xff] %vm209, %v175
  %240 = vst.msk [vmem:[%s3 + $0xf0] sm:$0xff] %vm209, %v176
  %241 = vst.msk [vmem:[%s3 + $0xf8] sm:$0xff] %vm209, %v177
  %242 = vst.msk [vmem:[%s3 + $0x100] sm:$0xff] %vm209, %v178
  %243 = vst.msk [vmem:[%s3 + $0x108] sm:$0xff] %vm209, %v179
  %244 = vst.msk [vmem:[%s3 + $0x110] sm:$0xff] %vm209, %v180
  %245 = vst.msk [vmem:[%s3 + $0x118] sm:$0xff] %vm209, %v181
  %246 = vst.msk [vmem:[%s3 + $0x120] sm:$0xff] %vm209, %v182
  %247 = vst.msk [vmem:[%s3 + $0x128] sm:$0xff] %vm209, %v183
  %248 = vst.msk [vmem:[%s3 + $0x130] sm:$0xff] %vm209, %v184
  %249 = vst.msk [vmem:[%s3 + $0x138] sm:$0xff] %vm209, %v185
  %250 = vst.msk [vmem:[%s3 + $0x140] sm:$0xff] %vm209, %v186
  %251 = vst.msk [vmem:[%s3 + $0x148] sm:$0xff] %vm209, %v187
  %252 = vst.msk [vmem:[%s3 + $0x150] sm:$0xff] %vm209, %v188
  %253 = vst.msk [vmem:[%s3 + $0x158] sm:$0xff] %vm209, %v189
  %254 = vst.msk [vmem:[%s3 + $0x160] sm:$0xff] %vm209, %v190
  %255 = vst.msk [vmem:[%s3 + $0x168] sm:$0xff] %vm209, %v191
  %256 = vst.msk [vmem:[%s3 + $0x170] sm:$0xff] %vm209, %v192
  %257 = vst.msk [vmem:[%s3 + $0x178] sm:$0xff] %vm209, %v193
  %258 = vst.msk [vmem:[%s3 + $0x180] sm:$0xff] %vm209, %v194
  %259 = vst.msk [vmem:[%s3 + $0x188] sm:$0xff] %vm209, %v195
  %260 = vst.msk [vmem:[%s3 + $0x190] sm:$0xff] %vm209, %v196
  %261 = vst.msk [vmem:[%s3 + $0x198] sm:$0xff] %vm209, %v197
  %262 = vst.msk [vmem:[%s3 + $0x1a0] sm:$0xff] %vm209, %v198
  %263 = vst.msk [vmem:[%s3 + $0x1a8] sm:$0xff] %vm209, %v199
  %264 = vst.msk [vmem:[%s3 + $0x1b0] sm:$0xff] %vm209, %v200
  %265 = vst.msk [vmem:[%s3 + $0x1b8] sm:$0xff] %vm209, %v201
  %266 = vst.msk [vmem:[%s3 + $0x1c0] sm:$0xff] %vm209, %v202
  %267 = vst.msk [vmem:[%s3 + $0x1c8] sm:$0xff] %vm209, %v203
  %268 = vst.msk [vmem:[%s3 + $0x1d0] sm:$0xff] %vm209, %v204
  %269 = vst.msk [vmem:[%s3 + $0x1d8] sm:$0xff] %vm209, %v205
  %270 = vst.msk [vmem:[%s3 + $0x1e0] sm:$0xff] %vm209, %v206
  %271 = vst.msk [vmem:[%s3 + $0x1e8] sm:$0xff] %vm209, %v207
  %vm272 = vcmask 3072
  %273 = vst.msk [vmem:[%s3 + $0x1f0] sm:$0xf] %vm272, %v208
  // Predicated region
  $region14: #{tpu_custom_call.1} parent=0 // pred_check
    _
  $region15: #{tpu_custom_call.1} parent=0 // pred_check_branch
    %275 = sbr.rel (0) target = $region17
  $region16: #{tpu_custom_call.1} parent=0 // pred_region
    _
  $region17: #{tpu_custom_call.1} parent=0 // pred_fallthru
    _
  // Predicated region
  $region18: #{tpu_custom_call.1} parent=0 // pred_check
    _
  $region19: #{tpu_custom_call.1} parent=0 // pred_check_branch
    %277 = sbr.rel (0) target = $region21
  $region20: #{tpu_custom_call.1} parent=0 // pred_region
    _
  $region21: #{tpu_custom_call.1} parent=0 // pred_fallthru
    _

</llo_original>
